<compile_context>
chip_gen: v6e
topology: v6e:2x2x1
jax: 0.10.0
libtpu: 0.0.40
codegen_flags: <defaults>
</compile_context>

<pallas_src>
import functools

import numpy as np

import jax
import jax.numpy as jnp
from jax import lax
from jax.experimental import pallas as pl
from jax.experimental.pallas import tpu as pltpu

_RAND_BITS = 15            # fixed-point resolution for neighbour selection
_RAND_MAX = 1 << _RAND_BITS
_INTERLEAVE = 4            # independent walkers interleaved per scalar-loop body

try:
    _TRACER_TYPES = (jax.core.Tracer,)
except AttributeError:     # extremely new jax: only disables layer-side caching
    _TRACER_TYPES = ()


def _is_tracer(x):
    return bool(_TRACER_TYPES) and isinstance(x, _TRACER_TYPES)


# --------------------------------------------------------------------------- #
# Pallas kernel: uniform random walks over a CSR graph (TPU scalar core, SMEM) #
# --------------------------------------------------------------------------- #
def _random_walk_kernel(walk_length, rowptr_ref, deg_ref, col_ref, start_ref,
                        rand_ref, eid_ref):
    """Interleaved uniform random walks over a CSR graph.

    rowptr_ref : SMEM (num_nodes + 1,) int32   CSR row pointers
    deg_ref    : SMEM (num_nodes + 1,) int32   out-degree per node (+ sentinel 0)
    col_ref    : SMEM (num_edges + 1,) int32   CSR column indices (+ 1 pad entry)
    start_ref  : SMEM (num_walkers,)   int32   root node per walker
                 (num_walkers is a multiple of _INTERLEAVE; padded walkers start
                  at the sentinel node `num_nodes`, which has degree 0)
    rand_ref   : SMEM (num_walkers * walk_length,) int32  randoms in [0, 2^15)
    eid_ref    : SMEM (num_walkers * walk_length,) int32  visited edge ids
                 (-1 where the current node had no out-neighbour)
    """
    num_walkers = start_ref.shape[0]
    num_groups = num_walkers // _INTERLEAVE
    # Cap the unroll: full unroll is fine for the usual walk_length=3, but for
    # long walks it would inflate sreg pressure / scalar footprint.
    unroll = True if walk_length <= 4 else 4

    def walk_group(g, carry):
        w0 = g * _INTERLEAVE
        # hoisted per-walker bases (w*walk_length) out of the step loop
        bases = tuple(w0 * walk_length + i * walk_length
                      for i in range(_INTERLEAVE))
        curs = tuple(start_ref[w0 + i] for i in range(_INTERLEAVE))

        def step(t, curs):
            nxt = []
            # _INTERLEAVE independent sld->use chains per step: fills both
            # scalar ALU slots and hides SMEM load latency.
            for i in range(_INTERLEAVE):
                cur = curs[i]
                d = deg_ref[cur]
                lo = rowptr_ref[cur]
                r = rand_ref[bases[i] + t]
                # fixed-point uniform choice: floor(r * d / 2^15) in [0, d)
                # for d > 0 (exact; no min/max clamps needed).
                # TODO(synk): r*d wraps int32 for degrees >= 2^16; use a
                # multiply-high formulation for very-high-degree graphs.
                e = lo + jnp.right_shift(r * d, _RAND_BITS)
                has = d > 0
                eid_ref[bases[i] + t] = jnp.where(has, e, jnp.int32(-1))
                # col is padded by one entry, so the (discarded) read at e == E
                # when d == 0 stays in bounds.
                nxt.append(jnp.where(has, col_ref[e], cur))
            return tuple(nxt)

        lax.fori_loop(0, walk_length, step, curs, unroll=unroll)
        return carry

    lax.fori_loop(0, num_groups, walk_group, jnp.int32(0))


def _pallas_random_walk(rowptr, deg, col, start_nodes, rand, walk_length):
    """Runs the scalar random-walk kernel; returns visited edge ids (W*L,)."""
    num_walkers = int(start_nodes.shape[0])
    walk_length = int(walk_length)
    assert num_walkers % _INTERLEAVE == 0, \
        "pad the walker count to a multiple of _INTERLEAVE"
    kernel = functools.partial(_random_walk_kernel, walk_length)
    # TODO(synk): for large graphs (E >~ 1e5) `col` no longer fits SMEM; stage
    # it from HBM (memory_space=pl.ANY + make_async_copy) or switch to a
    # step-major vectorized-gather formulation for large walker counts.
    # TODO(synk): on v7x, shard walker groups across the two TensorCores
    # (grid over walker chunks + dimension_semantics=("parallel",)).
    return pl.pallas_call(
        kernel,
        out_shape=jax.ShapeDtypeStruct((num_walkers * walk_length,), jnp.int32),
        in_specs=[pl.BlockSpec(memory_space=pltpu.SMEM)] * 5,
        out_specs=pl.BlockSpec(memory_space=pltpu.SMEM),
    )(rowptr.astype(jnp.int32), deg.astype(jnp.int32), col.astype(jnp.int32),
      start_nodes.astype(jnp.int32), rand.astype(jnp.int32))


def _walk_reference(rowptr, deg, col, starts, rand, walk_length):
    """Pure-NumPy reference of the kernel's fixed-point random walk (testing)."""
    W = int(starts.shape[0])
    eids = np.full((W * walk_length,), -1, np.int32)
    for w in range(W):
        cur = int(starts[w])
        for t in range(walk_length):
            d = int(deg[cur])
            if d > 0:
                lo = int(rowptr[cur])
                e = lo + ((int(rand[w * walk_length + t]) * d) >> _RAND_BITS)
                eids[w * walk_length + t] = e
                cur = int(col[e])
    return eids


# --------------------------------------------------------------------------- #
# Wrapper: CSR construction, root selection, drop mask, compaction             #
# --------------------------------------------------------------------------- #
def _build_csr(edge_index, num_nodes, is_sorted):
    """Sorts edges into CSR order and builds the kernel-side arrays.

    Returns (edge_index_sorted, perm_or_None, rowptr[N+1], deg[N+1], col[E+1]).
    deg/col carry one extra sentinel entry (degree-0 virtual node / safe pad
    read) so the kernel needs no bounds clamps in its scalar inner loop.
    """
    edge_index = jnp.asarray(edge_index, jnp.int32)
    if not is_sorted:
        perm = jnp.lexsort((edge_index[1], edge_index[0]))   # by (row, col)
        edge_index = edge_index[:, perm]
    else:
        perm = None
    # clip keeps all in-kernel SMEM indexing in bounds even for invalid ids
    row = jnp.clip(edge_index[0], 0, num_nodes - 1)
    col = jnp.clip(edge_index[1], 0, num_nodes - 1)
    deg = jnp.bincount(row, length=num_nodes).astype(jnp.int32)
    rowptr = jnp.concatenate(
        [jnp.zeros((1,), jnp.int32), jnp.cumsum(deg)]).astype(jnp.int32)
    deg_p = jnp.concatenate([deg, jnp.zeros((1,), jnp.int32)])
    col_p = jnp.concatenate([col.astype(jnp.int32), jnp.zeros((1,), jnp.int32)])
    return edge_index, perm, rowptr, deg_p, col_p


def drop_path(edge_index, edge_weight=None, *, p=0.5, walks_per_node=1,
              walk_length=3, num_nodes=None, start='node', is_sorted=False,
              training=True, key=None, csr=None):
    """JAX/Pallas analogue of mooon.drop_path.

    Returns (edge_index_out, edge_weight_out, num_kept, keep) where kept edges
    (in sorted-edge order) are compacted to the front; columns >= num_kept are
    padding (-1 for indices, 0 for weights). `keep` is the per-sorted-edge mask.

    Jit-friendly when `num_nodes` is a static int (no host sync); pass a
    precomputed `csr` (from _build_csr) to skip the per-call sort.
    """
    if p < 0.0 or p > 1.0:
        raise ValueError(f"Sample probability has to be between 0 and 1 (got {p})")

    edge_index = jnp.asarray(edge_index, jnp.int32)
    num_edges = int(edge_index.shape[1])
    had_weight = edge_weight is not None
    if had_weight:
        edge_weight = jnp.asarray(edge_weight)

    if (not training) or p == 0.0 or num_edges == 0:
        keep = jnp.ones((num_edges,), bool)
        return (edge_index, (edge_weight if had_weight else None),
                jnp.asarray(num_edges, jnp.int32), keep)

    if key is None:
        key = jax.random.PRNGKey(0)

    if num_nodes is None:
        if _is_tracer(edge_index):
            raise ValueError(
                "num_nodes must be provided when drop_path is traced (e.g. "
                "under jax.jit); deriving it requires a device->host sync.")
        # TODO(synk): this forces a device->host sync; pass num_nodes (or use
        # the DropPath layer's CSR cache) in hot paths.
        num_nodes = int(jnp.max(edge_index)) + 1
    num_nodes = int(num_nodes)

    # --- CSR construction (or reuse a cached one) ----------------------------
    if csr is None:
        csr = _build_csr(edge_index, num_nodes, is_sorted)
    edge_index, perm, rowptr, deg_p, col_p = csr
    if had_weight and perm is not None:
        edge_weight = edge_weight[perm]

    # --- root-node selection --------------------------------------------------
    k_start, k_walk = jax.random.split(key)
    if isinstance(start, str):
        if start == 'node':
            n_start = int(round(num_nodes * p))
            start_nodes = jax.random.permutation(k_start, num_nodes)[:n_start]
        elif start == 'edge':
            # TODO(synk): start='edge' yields a data-dependent number of
            # walkers; not representable with fixed shapes in this JAX port.
            raise NotImplementedError(
                "start='edge' is not supported in the Pallas port")
        else:
            raise ValueError(f"Invalid start: {start}")
    else:
        start_nodes = jnp.asarray(start)
        if start_nodes.dtype == jnp.bool_:
            start_nodes = jnp.nonzero(start_nodes)[0]
        start_nodes = start_nodes.reshape(-1)
    start_nodes = jnp.clip(start_nodes.astype(jnp.int32), 0, num_nodes - 1)
    start_nodes = jnp.tile(start_nodes, int(walks_per_node))
    num_walkers = int(start_nodes.shape[0])
    walk_length = int(walk_length)

    # --- random walks (Pallas kernel) + drop mask -----------------------------
    keep = jnp.ones((num_edges,), bool)
    if num_walkers > 0 and walk_length > 0:
        # Pad walkers to a multiple of the interleave width with the sentinel
        # "isolated node" (id == num_nodes, degree 0) so padded walkers only
        # emit -1 edge ids.
        pad = (-num_walkers) % _INTERLEAVE
        if pad:
            start_nodes = jnp.concatenate(
                [start_nodes, jnp.full((pad,), num_nodes, jnp.int32)])
        num_padded = num_walkers + pad
        rand = jax.random.randint(k_walk, (num_padded * walk_length,),
                                  0, _RAND_MAX, dtype=jnp.int32)
        e_ids = _pallas_random_walk(rowptr, deg_p, col_p, start_nodes, rand,
                                    walk_length)
        # invalid (-1) walk steps are sent out of bounds and dropped by the scatter
        drop_idx = jnp.where(e_ids >= 0, e_ids, num_edges)
        keep = keep.at[drop_idx].set(False, mode='drop')

    # --- linear compaction: cumsum + scatter ----------------------------------
    num_kept = jnp.sum(keep.astype(jnp.int32))
    pos = jnp.cumsum(keep.astype(jnp.int32)) - 1
    dest = jnp.where(keep, pos, num_edges)                  # dropped -> OOB
    ei_out = jnp.full_like(edge_index, -1).at[:, dest].set(edge_index, mode='drop')
    ew_out = None
    if had_weight:
        ew_out = jnp.zeros_like(edge_weight).at[dest].set(edge_weight, mode='drop')
    return ei_out, ew_out, num_kept, keep


class DropPath:
    """DropPath layer (random-walk structured edge dropout), Pallas-backed.

    Caches the CSR (lexsort + rowptr/deg/col) across calls with the same
    edge_index object — the common static-graph training-loop case — so the
    per-call O(E log E) sort is removed from the hot path.
    """

    def __init__(self, p: float = 0.5, walks_per_node: int = 1,
                 walk_length: int = 3, num_nodes=None, start='node',
                 is_sorted: bool = False):
        if p < 0.0 or p > 1.0:
            raise ValueError(f"Sample probability has to be between 0 and 1 (got {p})")
        if not isinstance(start, str):
            start = jnp.asarray(start)
            if start.dtype == jnp.bool_:
                start = jnp.nonzero(start)[0]
        self.p = p
        self.walks_per_node = walks_per_node
        self.walk_length = walk_length
        self.num_nodes = num_nodes
        self.start = start
        self.is_sorted = is_sorted
        self.training = True
        self._csr_cache = None   # (edge_index_obj, num_nodes, csr_tuple)

    def __call__(self, edge_index, edge_weight=None, key=None):
        num_nodes = self.num_nodes
        csr = None
        num_edges = int(jnp.shape(edge_index)[1])
        cacheable = (not _is_tracer(edge_index)) and self.training \
            and self.p > 0 and num_edges > 0
        if cacheable:
            cached = self._csr_cache
            if cached is not None and cached[0] is edge_index:
                num_nodes, csr = cached[1], cached[2]
            else:
                if num_nodes is None:
                    num_nodes = int(jnp.max(jnp.asarray(edge_index))) + 1
                num_nodes = int(num_nodes)
                csr = _build_csr(jnp.asarray(edge_index, jnp.int32),
                                 num_nodes, self.is_sorted)
                self._csr_cache = (edge_index, num_nodes, csr)
        return drop_path(edge_index, edge_weight, p=self.p,
                         walks_per_node=self.walks_per_node,
                         walk_length=self.walk_length, num_nodes=num_nodes,
                         start=self.start, is_sorted=self.is_sorted,
                         training=self.training, key=key, csr=csr)


if __name__ == "__main__":
    # ---- 1. direct kernel check against a pure NumPy reference --------------
    rowptr = jnp.array([0, 2, 3, 6, 6, 7, 8], jnp.int32)        # 6 nodes, 8 edges
    deg_p = jnp.array([2, 1, 3, 0, 1, 1, 0], jnp.int32)         # + sentinel node 6
    col_p = jnp.array([1, 3, 2, 0, 3, 5, 4, 1, 0], jnp.int32)   # + 1 pad entry
    starts = jnp.array([0, 1, 2, 3, 4, 5, 6, 6], jnp.int32)     # 8 walkers (2 sentinels)
    L = 3
    rand = jax.random.randint(jax.random.PRNGKey(1), (int(starts.shape[0]) * L,),
                              0, _RAND_MAX, dtype=jnp.int32)
    e_ids = _pallas_random_walk(rowptr, deg_p, col_p, starts, rand, L)
    e_ids = jax.block_until_ready(e_ids)
    e_ref = _walk_reference(np.asarray(rowptr), np.asarray(deg_p),
                            np.asarray(col_p), np.asarray(starts),
                            np.asarray(rand), L)
    assert np.array_equal(np.asarray(e_ids), e_ref), (np.asarray(e_ids), e_ref)

    # ---- 2. end-to-end DropPath demo -----------------------------------------
    root_key = jax.random.PRNGKey(0)
    k_ei, k_ew, k_drop = jax.random.split(root_key, 3)

    num_nodes, num_edges = 12, 32
    edge_index = jax.random.randint(k_ei, (2, num_edges), 0, num_nodes,
                                    dtype=jnp.int32)
    edge_weight = jax.random.uniform(k_ew, (num_edges,), jnp.float32)

    layer = DropPath(p=0.5, walks_per_node=1, walk_length=3, num_nodes=num_nodes)
    ei_out, ew_out, num_kept, keep = layer(edge_index, edge_weight, key=k_drop)
    jax.block_until_ready((ei_out, ew_out, num_kept, keep))

    nk = int(num_kept)
    assert ei_out.shape == edge_index.shape
    assert ew_out.shape == edge_weight.shape
    assert keep.shape == (num_edges,)
    assert nk == int(keep.sum())
    assert 0 <= nk <= num_edges
    # kept prefix contains valid node ids; padding columns are -1 / 0
    assert bool(jnp.all(ei_out[:, :nk] >= 0))
    assert bool(jnp.all(ei_out[:, :nk] < num_nodes))
    if nk < num_edges:
        assert bool(jnp.all(ei_out[:, nk:] == -1))
        assert bool(jnp.all(ew_out[nk:] == 0))

    # second call with the same edge_index object reuses the cached CSR
    ei2, ew2, nk2, keep2 = layer(edge_index, edge_weight, key=jax.random.PRNGKey(7))
    jax.block_until_ready((ei2, ew2, nk2, keep2))
    assert ei2.shape == edge_index.shape and 0 <= int(nk2) <= num_edges

    # jit-compatible when num_nodes is static (no host sync in the wrapper)
    jitted = jax.jit(functools.partial(drop_path, p=0.5, walks_per_node=1,
                                       walk_length=3, num_nodes=num_nodes))
    ei_j, ew_j, nk_j, keep_j = jitted(edge_index, edge_weight, key=k_drop)
    jax.block_until_ready((ei_j, ew_j, nk_j, keep_j))
    assert int(nk_j) == nk
    assert bool(jnp.array_equal(keep_j, keep))

    # eval mode is a no-op
    layer.training = False
    ei_eval, ew_eval, nk_eval, _ = layer(edge_index, edge_weight, key=k_drop)
    assert int(nk_eval) == num_edges
    assert bool(jnp.array_equal(ei_eval, edge_index))

    print("KERNEL_OK")
</pallas_src>

<mosaic_0001>
module attributes {stable_mosaic.version = 11 : i64} {
  func.func @_random_walk_kernel(%arg0: memref<7xi32, #tpu.memory_space<smem>>, %arg1: memref<7xi32, #tpu.memory_space<smem>>, %arg2: memref<9xi32, #tpu.memory_space<smem>>, %arg3: memref<8xi32, #tpu.memory_space<smem>>, %arg4: memref<24xi32, #tpu.memory_space<smem>>, %arg5: memref<24xi32, #tpu.memory_space<smem>>) attributes {dimension_semantics = [], scalar_prefetch = 0 : i64, scratch_operands = 0 : i64, tpu.core_type = #tpu.core_type<tc>} {
    %c0_i32 = arith.constant 0 : i32
    %c2_i32 = arith.constant 2 : i32
    %0 = arith.addi %c0_i32, %c2_i32 : i32
    %c1_i32 = arith.constant 1 : i32
    scf.for %arg6 = %c0_i32 to %0 step %c1_i32  : i32 {
      %c4_i32 = arith.constant 4 : i32
      %1 = arith.muli %arg6, %c4_i32 : i32
      %c3_i32 = arith.constant 3 : i32
      %2 = arith.muli %1, %c3_i32 : i32
      %c0_i32_1 = arith.constant 0 : i32
      %3 = arith.addi %2, %c0_i32_1 : i32
      %c3_i32_2 = arith.constant 3 : i32
      %4 = arith.muli %1, %c3_i32_2 : i32
      %c3_i32_3 = arith.constant 3 : i32
      %5 = arith.addi %4, %c3_i32_3 : i32
      %c3_i32_4 = arith.constant 3 : i32
      %6 = arith.muli %1, %c3_i32_4 : i32
      %c6_i32 = arith.constant 6 : i32
      %7 = arith.addi %6, %c6_i32 : i32
      %c3_i32_5 = arith.constant 3 : i32
      %8 = arith.muli %1, %c3_i32_5 : i32
      %c9_i32 = arith.constant 9 : i32
      %9 = arith.addi %8, %c9_i32 : i32
      %c0_i32_6 = arith.constant 0 : i32
      %10 = arith.addi %1, %c0_i32_6 : i32
      %11 = arith.index_cast %10 : i32 to index
      %12 = memref.load %arg3[%11] : memref<8xi32, #tpu.memory_space<smem>>
      %c1_i32_7 = arith.constant 1 : i32
      %13 = arith.addi %1, %c1_i32_7 : i32
      %14 = arith.index_cast %13 : i32 to index
      %15 = memref.load %arg3[%14] : memref<8xi32, #tpu.memory_space<smem>>
      %c2_i32_8 = arith.constant 2 : i32
      %16 = arith.addi %1, %c2_i32_8 : i32
      %17 = arith.index_cast %16 : i32 to index
      %18 = memref.load %arg3[%17] : memref<8xi32, #tpu.memory_space<smem>>
      %c3_i32_9 = arith.constant 3 : i32
      %19 = arith.addi %1, %c3_i32_9 : i32
      %20 = arith.index_cast %19 : i32 to index
      %21 = memref.load %arg3[%20] : memref<8xi32, #tpu.memory_space<smem>>
      %c0_i32_10 = arith.constant 0 : i32
      %22 = arith.index_cast %12 : i32 to index
      %23 = memref.load %arg1[%22] : memref<7xi32, #tpu.memory_space<smem>>
      %24 = arith.index_cast %12 : i32 to index
      %25 = memref.load %arg0[%24] : memref<7xi32, #tpu.memory_space<smem>>
      %26 = arith.addi %3, %c0_i32_10 : i32
      %27 = arith.index_cast %26 : i32 to index
      %28 = memref.load %arg4[%27] : memref<24xi32, #tpu.memory_space<smem>>
      %29 = arith.muli %28, %23 : i32
      %c15_i32 = arith.constant 15 : i32
      %30 = arith.shrsi %29, %c15_i32 : i32
      %31 = arith.addi %25, %30 : i32
      %c0_i32_11 = arith.constant 0 : i32
      %32 = arith.cmpi sgt, %23, %c0_i32_11 : i32
      %c-1_i32 = arith.constant -1 : i32
      %33 = arith.select %32, %31, %c-1_i32 : i32
      %34 = arith.addi %3, %c0_i32_10 : i32
      %35 = arith.index_cast %34 : i32 to index
      %36 = memref.load %arg5[%35] : memref<24xi32, #tpu.memory_space<smem>>
      memref.store %33, %arg5[%35] : memref<24xi32, #tpu.memory_space<smem>>
      %37 = arith.index_cast %31 : i32 to index
      %38 = memref.load %arg2[%37] : memref<9xi32, #tpu.memory_space<smem>>
      %39 = arith.select %32, %38, %12 : i32
      %40 = arith.index_cast %15 : i32 to index
      %41 = memref.load %arg1[%40] : memref<7xi32, #tpu.memory_space<smem>>
      %42 = arith.index_cast %15 : i32 to index
      %43 = memref.load %arg0[%42] : memref<7xi32, #tpu.memory_space<smem>>
      %44 = arith.addi %5, %c0_i32_10 : i32
      %45 = arith.index_cast %44 : i32 to index
      %46 = memref.load %arg4[%45] : memref<24xi32, #tpu.memory_space<smem>>
      %47 = arith.muli %46, %41 : i32
      %c15_i32_12 = arith.constant 15 : i32
      %48 = arith.shrsi %47, %c15_i32_12 : i32
      %49 = arith.addi %43, %48 : i32
      %c0_i32_13 = arith.constant 0 : i32
      %50 = arith.cmpi sgt, %41, %c0_i32_13 : i32
      %c-1_i32_14 = arith.constant -1 : i32
      %51 = arith.select %50, %49, %c-1_i32_14 : i32
      %52 = arith.addi %5, %c0_i32_10 : i32
      %53 = arith.index_cast %52 : i32 to index
      %54 = memref.load %arg5[%53] : memref<24xi32, #tpu.memory_space<smem>>
      memref.store %51, %arg5[%53] : memref<24xi32, #tpu.memory_space<smem>>
      %55 = arith.index_cast %49 : i32 to index
      %56 = memref.load %arg2[%55] : memref<9xi32, #tpu.memory_space<smem>>
      %57 = arith.select %50, %56, %15 : i32
      %58 = arith.index_cast %18 : i32 to index
      %59 = memref.load %arg1[%58] : memref<7xi32, #tpu.memory_space<smem>>
      %60 = arith.index_cast %18 : i32 to index
      %61 = memref.load %arg0[%60] : memref<7xi32, #tpu.memory_space<smem>>
      %62 = arith.addi %7, %c0_i32_10 : i32
      %63 = arith.index_cast %62 : i32 to index
      %64 = memref.load %arg4[%63] : memref<24xi32, #tpu.memory_space<smem>>
      %65 = arith.muli %64, %59 : i32
      %c15_i32_15 = arith.constant 15 : i32
      %66 = arith.shrsi %65, %c15_i32_15 : i32
      %67 = arith.addi %61, %66 : i32
      %c0_i32_16 = arith.constant 0 : i32
      %68 = arith.cmpi sgt, %59, %c0_i32_16 : i32
      %c-1_i32_17 = arith.constant -1 : i32
      %69 = arith.select %68, %67, %c-1_i32_17 : i32
      %70 = arith.addi %7, %c0_i32_10 : i32
      %71 = arith.index_cast %70 : i32 to index
      %72 = memref.load %arg5[%71] : memref<24xi32, #tpu.memory_space<smem>>
      memref.store %69, %arg5[%71] : memref<24xi32, #tpu.memory_space<smem>>
      %73 = arith.index_cast %67 : i32 to index
      %74 = memref.load %arg2[%73] : memref<9xi32, #tpu.memory_space<smem>>
      %75 = arith.select %68, %74, %18 : i32
      %76 = arith.index_cast %21 : i32 to index
      %77 = memref.load %arg1[%76] : memref<7xi32, #tpu.memory_space<smem>>
      %78 = arith.index_cast %21 : i32 to index
      %79 = memref.load %arg0[%78] : memref<7xi32, #tpu.memory_space<smem>>
      %80 = arith.addi %9, %c0_i32_10 : i32
      %81 = arith.index_cast %80 : i32 to index
      %82 = memref.load %arg4[%81] : memref<24xi32, #tpu.memory_space<smem>>
      %83 = arith.muli %82, %77 : i32
      %c15_i32_18 = arith.constant 15 : i32
      %84 = arith.shrsi %83, %c15_i32_18 : i32
      %85 = arith.addi %79, %84 : i32
      %c0_i32_19 = arith.constant 0 : i32
      %86 = arith.cmpi sgt, %77, %c0_i32_19 : i32
      %c-1_i32_20 = arith.constant -1 : i32
      %87 = arith.select %86, %85, %c-1_i32_20 : i32
      %88 = arith.addi %9, %c0_i32_10 : i32
      %89 = arith.index_cast %88 : i32 to index
      %90 = memref.load %arg5[%89] : memref<24xi32, #tpu.memory_space<smem>>
      memref.store %87, %arg5[%89] : memref<24xi32, #tpu.memory_space<smem>>
      %91 = arith.index_cast %85 : i32 to index
      %92 = memref.load %arg2[%91] : memref<9xi32, #tpu.memory_space<smem>>
      %93 = arith.select %86, %92, %21 : i32
      %c1_i32_21 = arith.constant 1 : i32
      %94 = arith.index_cast %39 : i32 to index
      %95 = memref.load %arg1[%94] : memref<7xi32, #tpu.memory_space<smem>>
      %96 = arith.index_cast %39 : i32 to index
      %97 = memref.load %arg0[%96] : memref<7xi32, #tpu.memory_space<smem>>
      %98 = arith.addi %3, %c1_i32_21 : i32
      %99 = arith.index_cast %98 : i32 to index
      %100 = memref.load %arg4[%99] : memref<24xi32, #tpu.memory_space<smem>>
      %101 = arith.muli %100, %95 : i32
      %c15_i32_22 = arith.constant 15 : i32
      %102 = arith.shrsi %101, %c15_i32_22 : i32
      %103 = arith.addi %97, %102 : i32
      %c0_i32_23 = arith.constant 0 : i32
      %104 = arith.cmpi sgt, %95, %c0_i32_23 : i32
      %c-1_i32_24 = arith.constant -1 : i32
      %105 = arith.select %104, %103, %c-1_i32_24 : i32
      %106 = arith.addi %3, %c1_i32_21 : i32
      %107 = arith.index_cast %106 : i32 to index
      %108 = memref.load %arg5[%107] : memref<24xi32, #tpu.memory_space<smem>>
      memref.store %105, %arg5[%107] : memref<24xi32, #tpu.memory_space<smem>>
      %109 = arith.index_cast %103 : i32 to index
      %110 = memref.load %arg2[%109] : memref<9xi32, #tpu.memory_space<smem>>
      %111 = arith.select %104, %110, %39 : i32
      %112 = arith.index_cast %57 : i32 to index
      %113 = memref.load %arg1[%112] : memref<7xi32, #tpu.memory_space<smem>>
      %114 = arith.index_cast %57 : i32 to index
      %115 = memref.load %arg0[%114] : memref<7xi32, #tpu.memory_space<smem>>
      %116 = arith.addi %5, %c1_i32_21 : i32
      %117 = arith.index_cast %116 : i32 to index
      %118 = memref.load %arg4[%117] : memref<24xi32, #tpu.memory_space<smem>>
      %119 = arith.muli %118, %113 : i32
      %c15_i32_25 = arith.constant 15 : i32
      %120 = arith.shrsi %119, %c15_i32_25 : i32
      %121 = arith.addi %115, %120 : i32
      %c0_i32_26 = arith.constant 0 : i32
      %122 = arith.cmpi sgt, %113, %c0_i32_26 : i32
      %c-1_i32_27 = arith.constant -1 : i32
      %123 = arith.select %122, %121, %c-1_i32_27 : i32
      %124 = arith.addi %5, %c1_i32_21 : i32
      %125 = arith.index_cast %124 : i32 to index
      %126 = memref.load %arg5[%125] : memref<24xi32, #tpu.memory_space<smem>>
      memref.store %123, %arg5[%125] : memref<24xi32, #tpu.memory_space<smem>>
      %127 = arith.index_cast %121 : i32 to index
      %128 = memref.load %arg2[%127] : memref<9xi32, #tpu.memory_space<smem>>
      %129 = arith.select %122, %128, %57 : i32
      %130 = arith.index_cast %75 : i32 to index
      %131 = memref.load %arg1[%130] : memref<7xi32, #tpu.memory_space<smem>>
      %132 = arith.index_cast %75 : i32 to index
      %133 = memref.load %arg0[%132] : memref<7xi32, #tpu.memory_space<smem>>
      %134 = arith.addi %7, %c1_i32_21 : i32
      %135 = arith.index_cast %134 : i32 to index
      %136 = memref.load %arg4[%135] : memref<24xi32, #tpu.memory_space<smem>>
      %137 = arith.muli %136, %131 : i32
      %c15_i32_28 = arith.constant 15 : i32
      %138 = arith.shrsi %137, %c15_i32_28 : i32
      %139 = arith.addi %133, %138 : i32
      %c0_i32_29 = arith.constant 0 : i32
      %140 = arith.cmpi sgt, %131, %c0_i32_29 : i32
      %c-1_i32_30 = arith.constant -1 : i32
      %141 = arith.select %140, %139, %c-1_i32_30 : i32
      %142 = arith.addi %7, %c1_i32_21 : i32
      %143 = arith.index_cast %142 : i32 to index
      %144 = memref.load %arg5[%143] : memref<24xi32, #tpu.memory_space<smem>>
      memref.store %141, %arg5[%143] : memref<24xi32, #tpu.memory_space<smem>>
      %145 = arith.index_cast %139 : i32 to index
      %146 = memref.load %arg2[%145] : memref<9xi32, #tpu.memory_space<smem>>
      %147 = arith.select %140, %146, %75 : i32
      %148 = arith.index_cast %93 : i32 to index
      %149 = memref.load %arg1[%148] : memref<7xi32, #tpu.memory_space<smem>>
      %150 = arith.index_cast %93 : i32 to index
      %151 = memref.load %arg0[%150] : memref<7xi32, #tpu.memory_space<smem>>
      %152 = arith.addi %9, %c1_i32_21 : i32
      %153 = arith.index_cast %152 : i32 to index
      %154 = memref.load %arg4[%153] : memref<24xi32, #tpu.memory_space<smem>>
      %155 = arith.muli %154, %149 : i32
      %c15_i32_31 = arith.constant 15 : i32
      %156 = arith.shrsi %155, %c15_i32_31 : i32
      %157 = arith.addi %151, %156 : i32
      %c0_i32_32 = arith.constant 0 : i32
      %158 = arith.cmpi sgt, %149, %c0_i32_32 : i32
      %c-1_i32_33 = arith.constant -1 : i32
      %159 = arith.select %158, %157, %c-1_i32_33 : i32
      %160 = arith.addi %9, %c1_i32_21 : i32
      %161 = arith.index_cast %160 : i32 to index
      %162 = memref.load %arg5[%161] : memref<24xi32, #tpu.memory_space<smem>>
      memref.store %159, %arg5[%161] : memref<24xi32, #tpu.memory_space<smem>>
      %163 = arith.index_cast %157 : i32 to index
      %164 = memref.load %arg2[%163] : memref<9xi32, #tpu.memory_space<smem>>
      %165 = arith.select %158, %164, %93 : i32
      %c2_i32_34 = arith.constant 2 : i32
      %166 = arith.index_cast %111 : i32 to index
      %167 = memref.load %arg1[%166] : memref<7xi32, #tpu.memory_space<smem>>
      %168 = arith.index_cast %111 : i32 to index
      %169 = memref.load %arg0[%168] : memref<7xi32, #tpu.memory_space<smem>>
      %170 = arith.addi %3, %c2_i32_34 : i32
      %171 = arith.index_cast %170 : i32 to index
      %172 = memref.load %arg4[%171] : memref<24xi32, #tpu.memory_space<smem>>
      %173 = arith.muli %172, %167 : i32
      %c15_i32_35 = arith.constant 15 : i32
      %174 = arith.shrsi %173, %c15_i32_35 : i32
      %175 = arith.addi %169, %174 : i32
      %c0_i32_36 = arith.constant 0 : i32
      %176 = arith.cmpi sgt, %167, %c0_i32_36 : i32
      %c-1_i32_37 = arith.constant -1 : i32
      %177 = arith.select %176, %175, %c-1_i32_37 : i32
      %178 = arith.addi %3, %c2_i32_34 : i32
      %179 = arith.index_cast %178 : i32 to index
      %180 = memref.load %arg5[%179] : memref<24xi32, #tpu.memory_space<smem>>
      memref.store %177, %arg5[%179] : memref<24xi32, #tpu.memory_space<smem>>
      %181 = arith.index_cast %175 : i32 to index
      %182 = memref.load %arg2[%181] : memref<9xi32, #tpu.memory_space<smem>>
      %183 = arith.select %176, %182, %111 : i32
      %184 = arith.index_cast %129 : i32 to index
      %185 = memref.load %arg1[%184] : memref<7xi32, #tpu.memory_space<smem>>
      %186 = arith.index_cast %129 : i32 to index
      %187 = memref.load %arg0[%186] : memref<7xi32, #tpu.memory_space<smem>>
      %188 = arith.addi %5, %c2_i32_34 : i32
      %189 = arith.index_cast %188 : i32 to index
      %190 = memref.load %arg4[%189] : memref<24xi32, #tpu.memory_space<smem>>
      %191 = arith.muli %190, %185 : i32
      %c15_i32_38 = arith.constant 15 : i32
      %192 = arith.shrsi %191, %c15_i32_38 : i32
      %193 = arith.addi %187, %192 : i32
      %c0_i32_39 = arith.constant 0 : i32
      %194 = arith.cmpi sgt, %185, %c0_i32_39 : i32
      %c-1_i32_40 = arith.constant -1 : i32
      %195 = arith.select %194, %193, %c-1_i32_40 : i32
      %196 = arith.addi %5, %c2_i32_34 : i32
      %197 = arith.index_cast %196 : i32 to index
      %198 = memref.load %arg5[%197] : memref<24xi32, #tpu.memory_space<smem>>
      memref.store %195, %arg5[%197] : memref<24xi32, #tpu.memory_space<smem>>
      %199 = arith.index_cast %193 : i32 to index
      %200 = memref.load %arg2[%199] : memref<9xi32, #tpu.memory_space<smem>>
      %201 = arith.select %194, %200, %129 : i32
      %202 = arith.index_cast %147 : i32 to index
      %203 = memref.load %arg1[%202] : memref<7xi32, #tpu.memory_space<smem>>
      %204 = arith.index_cast %147 : i32 to index
      %205 = memref.load %arg0[%204] : memref<7xi32, #tpu.memory_space<smem>>
      %206 = arith.addi %7, %c2_i32_34 : i32
      %207 = arith.index_cast %206 : i32 to index
      %208 = memref.load %arg4[%207] : memref<24xi32, #tpu.memory_space<smem>>
      %209 = arith.muli %208, %203 : i32
      %c15_i32_41 = arith.constant 15 : i32
      %210 = arith.shrsi %209, %c15_i32_41 : i32
      %211 = arith.addi %205, %210 : i32
      %c0_i32_42 = arith.constant 0 : i32
      %212 = arith.cmpi sgt, %203, %c0_i32_42 : i32
      %c-1_i32_43 = arith.constant -1 : i32
      %213 = arith.select %212, %211, %c-1_i32_43 : i32
      %214 = arith.addi %7, %c2_i32_34 : i32
      %215 = arith.index_cast %214 : i32 to index
      %216 = memref.load %arg5[%215] : memref<24xi32, #tpu.memory_space<smem>>
      memref.store %213, %arg5[%215] : memref<24xi32, #tpu.memory_space<smem>>
      %217 = arith.index_cast %211 : i32 to index
      %218 = memref.load %arg2[%217] : memref<9xi32, #tpu.memory_space<smem>>
      %219 = arith.select %212, %218, %147 : i32
      %220 = arith.index_cast %165 : i32 to index
      %221 = memref.load %arg1[%220] : memref<7xi32, #tpu.memory_space<smem>>
      %222 = arith.index_cast %165 : i32 to index
      %223 = memref.load %arg0[%222] : memref<7xi32, #tpu.memory_space<smem>>
      %224 = arith.addi %9, %c2_i32_34 : i32
      %225 = arith.index_cast %224 : i32 to index
      %226 = memref.load %arg4[%225] : memref<24xi32, #tpu.memory_space<smem>>
      %227 = arith.muli %226, %221 : i32
      %c15_i32_44 = arith.constant 15 : i32
      %228 = arith.shrsi %227, %c15_i32_44 : i32
      %229 = arith.addi %223, %228 : i32
      %c0_i32_45 = arith.constant 0 : i32
      %230 = arith.cmpi sgt, %221, %c0_i32_45 : i32
      %c-1_i32_46 = arith.constant -1 : i32
      %231 = arith.select %230, %229, %c-1_i32_46 : i32
      %232 = arith.addi %9, %c2_i32_34 : i32
      %233 = arith.index_cast %232 : i32 to index
      %234 = memref.load %arg5[%233] : memref<24xi32, #tpu.memory_space<smem>>
      memref.store %231, %arg5[%233] : memref<24xi32, #tpu.memory_space<smem>>
      %235 = arith.index_cast %229 : i32 to index
      %236 = memref.load %arg2[%235] : memref<9xi32, #tpu.memory_space<smem>>
      %237 = arith.select %230, %236, %165 : i32
      %c3_i32_47 = arith.constant 3 : i32
    }
    %c2_i32_0 = arith.constant 2 : i32
    return
  }
}

</mosaic_0001>

<llo_original>
// kernel: tpu_custom_call.1
$region0: #{tpu_custom_call.1}
  #allocation0 [shape = 'u32[]', space=smem, size = 0x4, offset = 0x4, fixed_abs, tag = 'smem constant byte address 0x4 - core index']
  #allocation1 [shape = 'u32[144,128]{1,0:T(1,128)}', space=vmem, size = 0x12000, scoped, tag = 'internal scratch']
  %s0 = inlined_call_operand.hbm [shape: s32[7], index: 0, kind: input, shape index: {}]
  %s1 = inlined_call_operand.vmem [shape: s32[7], index: 1, kind: input, shape index: {}]
  %s2 = inlined_call_operand.vmem [shape: s32[9], index: 2, kind: input, shape index: {}]
  %s3 = inlined_call_operand.vmem [shape: s32[8], index: 3, kind: input, shape index: {}]
  %s4 = inlined_call_operand.vmem [shape: s32[24], index: 4, kind: input, shape index: {}]
  %s5 = inlined_call_operand.hbm [shape: s32[24], index: 5, kind: output, shape index: {}]
  %s6 = sld [smem:[#allocation0]]
  $region57: #{tpu_custom_call.1} parent=0
    _
  %s8 = ssub.s32 1, %s6
  %s9 = scalar_select 0, %s8, %s6
  $region1: #{tpu_custom_call.1} parent=0
    #allocation2 [shape = 'u8[512]{0}', space=smem, size = 0x200, scoped, tag = 'input window, operand 0, single buffered']
    #allocation3 [shape = 's32[1]{0}', space=sflag, size = 0x4, scoped, tag = 'scoped memory for tpu_custom_call.1']
    #allocation4 [shape = 's32[1]{0}', space=sflag, size = 0x4, scoped, tag = 'scoped memory for tpu_custom_call.1']
    #allocation5 [shape = 's32[1]{0}', space=sflag, size = 0x4, scoped, tag = 'scoped memory for tpu_custom_call.1']
    #allocation6 [shape = 'u8[512]{0}', space=smem, size = 0x200, scoped, tag = 'input window, operand 1, single buffered']
    #allocation7 [shape = 'u8[512]{0}', space=smem, size = 0x200, scoped, tag = 'input window, operand 2, single buffered']
    #allocation8 [shape = 's32[1]{0}', space=sflag, size = 0x4, scoped, tag = 'scoped memory for tpu_custom_call.1']
    #allocation9 [shape = 'u8[512]{0}', space=smem, size = 0x200, scoped, tag = 'input window, operand 3, single buffered']
    #allocation10 [shape = 'u8[512]{0}', space=smem, size = 0x200, scoped, tag = 'input window, operand 4, single buffered']
    #allocation11 [shape = 's32[1]{0}', space=sflag, size = 0x4, scoped, tag = 'scoped memory for tpu_custom_call.1']
    #allocation12 [shape = 'u8[512]{0}', space=smem, size = 0x200, scoped, tag = 'output window, operand 0, single buffered']
    %10 = vsyncpa [#allocation3], 0
    %11 = vsyncpa [#allocation5], 0
    %12 = vsyncpa [#allocation8], 0
    %13 = vsyncpa [#allocation11], 0
    %14 = vsyncpa [#allocation4], 0
    // Predicated region
    $region2: #{tpu_custom_call.1} parent=1 // pred_check
      _
    $region3: #{tpu_custom_call.1} parent=1 // pred_check_branch
      %16 = sbr.rel (0) target = $region5
    $region4: #{tpu_custom_call.1} parent=1 // pred_region
      %s18 = ssub.s32 16, 16
      %19 = vsyncadd [#allocation3], %s18
      %22 = dma.hbm_to_smem %s0, 16, [#allocation2], [#allocation3]
    $region5: #{tpu_custom_call.1} parent=1 // pred_fallthru
      _
    // Predicated region
    $region6: #{tpu_custom_call.1} parent=1 // pred_check
      _
    $region7: #{tpu_custom_call.1} parent=1 // pred_check_branch
      %24 = sbr.rel (0) target = $region9
    $region8: #{tpu_custom_call.1} parent=1 // pred_region
      %s26 = ssub.s32 16, 16
      %27 = vsyncadd [#allocation5], %s26
      %s29 = sshll.u32 %s1, 4
      %s30 = int_to_ptr.vmem [resolvable:$true] %s29
      %32 = dma.vmem_to_smem %s30, 16, [#allocation6], [#allocation5]
    $region9: #{tpu_custom_call.1} parent=1 // pred_fallthru
      _
    // Predicated region
    $region10: #{tpu_custom_call.1} parent=1 // pred_check
      _
    $region11: #{tpu_custom_call.1} parent=1 // pred_check_branch
      %34 = sbr.rel (0) target = $region13
    $region12: #{tpu_custom_call.1} parent=1 // pred_region
      %s36 = ssub.s32 16, 16
      %37 = vsyncadd [#allocation8], %s36
      %s39 = sshll.u32 %s2, 4
      %s40 = int_to_ptr.vmem [resolvable:$true] %s39
      %42 = dma.vmem_to_smem %s40, 16, [#allocation7], [#allocation8]
    $region13: #{tpu_custom_call.1} parent=1 // pred_fallthru
      _
    // Predicated region
    $region14: #{tpu_custom_call.1} parent=1 // pred_check
      _
    $region15: #{tpu_custom_call.1} parent=1 // pred_check_branch
      %44 = sbr.rel (0) target = $region17
    $region16: #{tpu_custom_call.1} parent=1 // pred_region
      %s46 = ssub.s32 16, 16
      %47 = vsyncadd [#allocation8], %s46
      %s49 = sshll.u32 %s3, 4
      %s50 = int_to_ptr.vmem [resolvable:$true] %s49
      %52 = dma.vmem_to_smem %s50, 16, [#allocation9], [#allocation8]
    $region17: #{tpu_custom_call.1} parent=1 // pred_fallthru
      _
    // Predicated region
    $region18: #{tpu_custom_call.1} parent=1 // pred_check
      _
    $region19: #{tpu_custom_call.1} parent=1 // pred_check_branch
      %54 = sbr.rel (0) target = $region21
    $region20: #{tpu_custom_call.1} parent=1 // pred_region
      %s56 = ssub.s32 16, 16
      %57 = vsyncadd [#allocation11], %s56
      %s59 = sshll.u32 %s4, 4
      %s60 = int_to_ptr.vmem [resolvable:$true] %s59
      %62 = dma.vmem_to_smem %s60, 16, [#allocation10], [#allocation11]
    $region21: #{tpu_custom_call.1} parent=1 // pred_fallthru
      _
    // Predicated region
    $region22: #{tpu_custom_call.1} parent=1 // pred_check
      _
    $region23: #{tpu_custom_call.1} parent=1 // pred_check_branch
      %64 = sbr.rel (0) target = $region25
    $region24: #{tpu_custom_call.1} parent=1 // pred_region
      %65 = dma.done [#allocation3], 16
    $region25: #{tpu_custom_call.1} parent=1 // pred_fallthru
      _
    // Predicated region
    $region26: #{tpu_custom_call.1} parent=1 // pred_check
      _
    $region27: #{tpu_custom_call.1} parent=1 // pred_check_branch
      %67 = sbr.rel (0) target = $region29
    $region28: #{tpu_custom_call.1} parent=1 // pred_region
      %68 = dma.done [#allocation5], 16
    $region29: #{tpu_custom_call.1} parent=1 // pred_fallthru
      _
    // Predicated region
    $region30: #{tpu_custom_call.1} parent=1 // pred_check
      _
    $region31: #{tpu_custom_call.1} parent=1 // pred_check_branch
      %70 = sbr.rel (0) target = $region33
    $region32: #{tpu_custom_call.1} parent=1 // pred_region
      %71 = dma.done [#allocation8], 16
    $region33: #{tpu_custom_call.1} parent=1 // pred_fallthru
      _
    // Predicated region
    $region34: #{tpu_custom_call.1} parent=1 // pred_check
      _
    $region35: #{tpu_custom_call.1} parent=1 // pred_check_branch
      %73 = sbr.rel (0) target = $region37
    $region36: #{tpu_custom_call.1} parent=1 // pred_region
      %74 = dma.done [#allocation8], 16
    $region37: #{tpu_custom_call.1} parent=1 // pred_fallthru
      _
    // Predicated region
    $region38: #{tpu_custom_call.1} parent=1 // pred_check
      _
    $region39: #{tpu_custom_call.1} parent=1 // pred_check_branch
      %76 = sbr.rel (0) target = $region41
    $region40: #{tpu_custom_call.1} parent=1 // pred_region
      %77 = dma.done [#allocation11], 16
    $region41: #{tpu_custom_call.1} parent=1 // pred_fallthru
      _
    %78 = sfence
    loop: start=0, step=1, limit=2
    $region42: #{tpu_custom_call.1} parent=1 // loop_pre_header
      _
    $region43: #{tpu_custom_call.1} parent=1 // loop_header
      %s80 = sphi 0, %s84
      %p81 = scmp.ge.s32.totalorder %s80, 2
    $region44: #{tpu_custom_call.1} parent=1 // loop_header_branch
      %83 = sbr.rel (%p81) target = $region48
    $region45: #{tpu_custom_call.1} parent=1 // loop_body
      %s85 = smul.u32 %s80, 4
      %s86 = smul.u32 %s80, 12
      %s87 = sadd.s32 %s86, 3
      %s88 = sadd.s32 %s86, 6
      %s89 = sadd.s32 %s86, 9
      %s90 = sld [smem:[#allocation9 + %s85]]
      %s91 = sadd.s32 %s85, 1
      %s92 = sld [smem:[#allocation9 + %s91]]
      %s93 = sadd.s32 %s85, 2
      %s94 = sld [smem:[#allocation9 + %s93]]
      %s95 = sadd.s32 %s85, 3
      %s96 = sld [smem:[#allocation9 + %s95]]
      %s97 = sld [smem:[#allocation6 + %s90]]
      %s98 = sld [smem:[#allocation2 + %s90]]
      %s99 = sld [smem:[#allocation10 + %s86]]
      %s100 = smul.u32 %s99, %s97
      %s101 = sshra.s32 %s100, 15
      %s102 = sadd.s32 %s98, %s101
      %p103 = scmp.gt.s32.totalorder %s97, 0
      %s104 = scalar_select %p103, %s102, 4294967295
      %s105 = scalar_lea.smem [#allocation12], %s86
      %106 = sst [smem:[%s105]] %s104
      %s107 = sld [smem:[#allocation7 + %s102]]
      %s108 = scalar_select %p103, %s107, %s90
      %s109 = sld [smem:[#allocation6 + %s92]]
      %s110 = sld [smem:[#allocation2 + %s92]]
      %s111 = sld [smem:[#allocation10 + %s87]]
      %s112 = smul.u32 %s111, %s109
      %s113 = sshra.s32 %s112, 15
      %s114 = sadd.s32 %s110, %s113
      %p115 = scmp.gt.s32.totalorder %s109, 0
      %s116 = scalar_select %p115, %s114, 4294967295
      %s117 = scalar_lea.smem [#allocation12], %s87
      %118 = sst [smem:[%s117]] %s116
      %s119 = sld [smem:[#allocation7 + %s114]]
      %s120 = scalar_select %p115, %s119, %s92
      %s121 = sld [smem:[#allocation6 + %s94]]
      %s122 = sld [smem:[#allocation2 + %s94]]
      %s123 = sld [smem:[#allocation10 + %s88]]
      %s124 = smul.u32 %s123, %s121
      %s125 = sshra.s32 %s124, 15
      %s126 = sadd.s32 %s122, %s125
      %p127 = scmp.gt.s32.totalorder %s121, 0
      %s128 = scalar_select %p127, %s126, 4294967295
      %s129 = scalar_lea.smem [#allocation12], %s88
      %130 = sst [smem:[%s129]] %s128
      %s131 = sld [smem:[#allocation7 + %s126]]
      %s132 = scalar_select %p127, %s131, %s94
      %s133 = sld [smem:[#allocation6 + %s96]]
      %s134 = sld [smem:[#allocation2 + %s96]]
      %s135 = sld [smem:[#allocation10 + %s89]]
      %s136 = smul.u32 %s135, %s133
      %s137 = sshra.s32 %s136, 15
      %s138 = sadd.s32 %s134, %s137
      %p139 = scmp.gt.s32.totalorder %s133, 0
      %s140 = scalar_select %p139, %s138, 4294967295
      %s141 = scalar_lea.smem [#allocation12], %s89
      %142 = sst [smem:[%s141]] %s140
      %s143 = sld [smem:[#allocation7 + %s138]]
      %s144 = scalar_select %p139, %s143, %s96
      %s145 = sld [smem:[#allocation6 + %s108]]
      %s146 = sld [smem:[#allocation2 + %s108]]
      %s147 = sadd.s32 %s86, 1
      %s148 = sld [smem:[#allocation10 + %s147]]
      %s149 = smul.u32 %s148, %s145
      %s150 = sshra.s32 %s149, 15
      %s151 = sadd.s32 %s146, %s150
      %p152 = scmp.gt.s32.totalorder %s145, 0
      %s153 = scalar_select %p152, %s151, 4294967295
      %s154 = scalar_lea.smem [#allocation12], %s147
      %155 = sst [smem:[%s154]] %s153
      %s156 = sld [smem:[#allocation7 + %s151]]
      %s157 = scalar_select %p152, %s156, %s108
      %s158 = sld [smem:[#allocation6 + %s120]]
      %s159 = sld [smem:[#allocation2 + %s120]]
      %s160 = sadd.s32 %s86, 4
      %s161 = sld [smem:[#allocation10 + %s160]]
      %s162 = smul.u32 %s161, %s158
      %s163 = sshra.s32 %s162, 15
      %s164 = sadd.s32 %s159, %s163
      %p165 = scmp.gt.s32.totalorder %s158, 0
      %s166 = scalar_select %p165, %s164, 4294967295
      %s167 = scalar_lea.smem [#allocation12], %s160
      %168 = sst [smem:[%s167]] %s166
      %s169 = sld [smem:[#allocation7 + %s164]]
      %s170 = scalar_select %p165, %s169, %s120
      %s171 = sld [smem:[#allocation6 + %s132]]
      %s172 = sld [smem:[#allocation2 + %s132]]
      %s173 = sadd.s32 %s86, 7
      %s174 = sld [smem:[#allocation10 + %s173]]
      %s175 = smul.u32 %s174, %s171
      %s176 = sshra.s32 %s175, 15
      %s177 = sadd.s32 %s172, %s176
      %p178 = scmp.gt.s32.totalorder %s171, 0
      %s179 = scalar_select %p178, %s177, 4294967295
      %s180 = scalar_lea.smem [#allocation12], %s173
      %181 = sst [smem:[%s180]] %s179
      %s182 = sld [smem:[#allocation7 + %s177]]
      %s183 = scalar_select %p178, %s182, %s132
      %s184 = sld [smem:[#allocation6 + %s144]]
      %s185 = sld [smem:[#allocation2 + %s144]]
      %s186 = sadd.s32 %s86, 10
      %s187 = sld [smem:[#allocation10 + %s186]]
      %s188 = smul.u32 %s187, %s184
      %s189 = sshra.s32 %s188, 15
      %s190 = sadd.s32 %s185, %s189
      %p191 = scmp.gt.s32.totalorder %s184, 0
      %s192 = scalar_select %p191, %s190, 4294967295
      %s193 = scalar_lea.smem [#allocation12], %s186
      %194 = sst [smem:[%s193]] %s192
      %s195 = sld [smem:[#allocation7 + %s190]]
      %s196 = scalar_select %p191, %s195, %s144
      %s197 = sld [smem:[#allocation6 + %s157]]
      %s198 = sld [smem:[#allocation2 + %s157]]
      %s199 = sadd.s32 %s86, 2
      %s200 = sld [smem:[#allocation10 + %s199]]
      %s201 = smul.u32 %s200, %s197
      %s202 = sshra.s32 %s201, 15
      %s203 = sadd.s32 %s198, %s202
      %p204 = scmp.gt.s32.totalorder %s197, 0
      %s205 = scalar_select %p204, %s203, 4294967295
      %s206 = scalar_lea.smem [#allocation12], %s199
      %207 = sst [smem:[%s206]] %s205
      %s208 = sld [smem:[#allocation6 + %s170]]
      %s209 = sld [smem:[#allocation2 + %s170]]
      %s210 = sadd.s32 %s86, 5
      %s211 = sld [smem:[#allocation10 + %s210]]
      %s212 = smul.u32 %s211, %s208
      %s213 = sshra.s32 %s212, 15
      %s214 = sadd.s32 %s209, %s213
      %p215 = scmp.gt.s32.totalorder %s208, 0
      %s216 = scalar_select %p215, %s214, 4294967295
      %s217 = scalar_lea.smem [#allocation12], %s210
      %218 = sst [smem:[%s217]] %s216
      %s219 = sld [smem:[#allocation6 + %s183]]
      %s220 = sld [smem:[#allocation2 + %s183]]
      %s221 = sadd.s32 %s86, 8
      %s222 = sld [smem:[#allocation10 + %s221]]
      %s223 = smul.u32 %s222, %s219
      %s224 = sshra.s32 %s223, 15
      %s225 = sadd.s32 %s220, %s224
      %p226 = scmp.gt.s32.totalorder %s219, 0
      %s227 = scalar_select %p226, %s225, 4294967295
      %s228 = scalar_lea.smem [#allocation12], %s221
      %229 = sst [smem:[%s228]] %s227
      %s230 = sld [smem:[#allocation6 + %s196]]
      %s231 = sld [smem:[#allocation2 + %s196]]
      %s232 = sadd.s32 %s86, 11
      %s233 = sld [smem:[#allocation10 + %s232]]
      %s234 = smul.u32 %s233, %s230
      %s235 = sshra.s32 %s234, 15
      %s236 = sadd.s32 %s231, %s235
      %p237 = scmp.gt.s32.totalorder %s230, 0
      %s238 = scalar_select %p237, %s236, 4294967295
      %s239 = scalar_lea.smem [#allocation12], %s232
      %240 = sst [smem:[%s239]] %s238
    $region46: #{tpu_custom_call.1} parent=1 // loop_footer
      %s84 = sadd.s32 1, %s80
    $region47: #{tpu_custom_call.1} parent=1 // loop_footer_branch
      %79 = sbr.rel target = $region43
    $region48: #{tpu_custom_call.1} parent=1 // loop_exit
      _
    // Predicated region
    $region49: #{tpu_custom_call.1} parent=1 // pred_check
      _
    $region50: #{tpu_custom_call.1} parent=1 // pred_check_branch
      %242 = sbr.rel (0) target = $region52
    $region51: #{tpu_custom_call.1} parent=1 // pred_region
      %s244 = ssub.s32 16, 16
      %245 = vsyncadd [#allocation4], %s244
      %248 = dma.smem_to_hbm [#allocation12], 16, %s5, [#allocation4]
    $region52: #{tpu_custom_call.1} parent=1 // pred_fallthru
      _
    // Predicated region
    $region53: #{tpu_custom_call.1} parent=1 // pred_check
      _
    $region54: #{tpu_custom_call.1} parent=1 // pred_check_branch
      %250 = sbr.rel (0) target = $region56
    $region55: #{tpu_custom_call.1} parent=1 // pred_region
      %251 = dma.done [#allocation4], 16
    $region56: #{tpu_custom_call.1} parent=1 // pred_fallthru
      _
    %252 = sfence
    %253 = vsyncpa [#allocation3], 1
    %254 = vsyncpa [#allocation4], 1
    %255 = vsyncpa [#allocation5], 1
    %256 = vsyncpa [#allocation8], 1
    %257 = vsyncpa [#allocation11], 1

</llo_original>
